<compile_context>
chip_gen: v6e
topology: v6e:2x2x1
jax: 0.10.0
libtpu: 0.0.40
codegen_flags: <defaults>
</compile_context>

<pallas_src>
import math

import jax
import jax.numpy as jnp
from jax.experimental import pallas as pl
from jax.experimental.pallas import tpu as pltpu


def _round_up(x, m):
    return ((x + m - 1) // m) * m


def _cdiv(a, b):
    return (a + b - 1) // b


# ---------------------------------------------------------------------------
# Fused kernel
# ---------------------------------------------------------------------------
def _make_siren_kernel(num_layers):
    """Fused SirenNet forward.

    Ref order: x, (W_0, b_0), ..., (W_{L-1}, b_{L-1}), W_last, b_last, out.
    Weights are pre-transposed to (Din, Dout), block-diagonally packed
    (g samples per row) and w0-folded, so the body is just sin(h @ W + b)
    chains plus a final plain linear.  Static unrolled layer loop: activations
    and all weights stay resident in VMEM/vregs, no HBM round-trips.
    """

    def kernel(*refs):
        x_ref = refs[0]
        o_ref = refs[-1]
        layer_refs = refs[1:-1]

        h = x_ref[...]
        for l in range(num_layers):
            w = layer_refs[2 * l][...]
            b = layer_refs[2 * l + 1][...]
            # w0 is already folded into w and b at param-prep time.
            h = jnp.sin(jnp.dot(h, w, preferred_element_type=jnp.float32) + b)

        w = layer_refs[2 * num_layers][...]
        b = layer_refs[2 * num_layers + 1][...]
        y = jnp.dot(h, w, preferred_element_type=jnp.float32) + b
        o_ref[...] = y.astype(o_ref.dtype)

    return kernel


# ---------------------------------------------------------------------------
# One-time parameter preparation (NOT per forward call)
# ---------------------------------------------------------------------------
def prepare_siren_params(params, *, w0=1.0, w0_initial=30.0):
    """Transpose, w0-fold and block-diagonally pack the SIREN parameters.

    params = {"hidden": [(W_l (dh, din_l), b_l (dh,)), ...],
              "last":   (W (do, dh), b (do,))}            (PyTorch layout)
    """
    hidden = params["hidden"]
    last_w, last_b = params["last"]
    num_layers = len(hidden)
    dim_in = int(hidden[0][0].shape[1])
    dim_hidden = int(hidden[0][0].shape[0])
    dim_out = int(last_w.shape[0])

    # Pack g samples per row along the lane axis when the hidden dim is narrow.
    g = max(1, 128 // dim_hidden) if dim_hidden < 128 else 1
    eye = jnp.eye(g, dtype=jnp.float32)

    def pack(w, b, scale):
        w_t = (scale * w.astype(jnp.float32)).T               # (din, dout)
        b_s = scale * b.astype(jnp.float32)                   # (dout,)
        w_p = jnp.kron(eye, w_t) if g > 1 else w_t             # (g*din, g*dout)
        b_p = jnp.tile(b_s, (g,)).reshape(1, -1)               # (1, g*dout)
        return w_p, b_p

    operands = []
    for l, (w, b) in enumerate(hidden):
        layer_w0 = w0_initial if l == 0 else w0
        operands.extend(pack(w, b, layer_w0))
    operands.extend(pack(last_w, last_b, 1.0))                 # last layer: no w0

    return {
        "operands": tuple(operands),
        "g": g,
        "num_layers": num_layers,
        "dim_in": dim_in,
        "dim_hidden": dim_hidden,
        "dim_out": dim_out,
    }


# ---------------------------------------------------------------------------
# Forward
# ---------------------------------------------------------------------------
def siren_net_forward(x, prepared, *, tile_b=512, mods=None):
    """SirenNet forward.  x: (B, dim_in) -> (B, dim_out) float32."""
    if mods is not None:
        # TODO(synk): per-layer multiplicative modulation (forward(x, mods=...))
        # is not fused; only the default mods=None path is implemented.
        raise NotImplementedError("mods are not supported by the fused kernel")

    g = prepared["g"]
    num_layers = prepared["num_layers"]
    dim_in = prepared["dim_in"]
    dim_hidden = prepared["dim_hidden"]
    dim_out = prepared["dim_out"]
    operands = prepared["operands"]

    B = x.shape[0]
    in_w = g * dim_in
    out_w = g * dim_out

    # Packed-row count and batch tiling: padding <= 7 packed rows in the last
    # block; >= 2 grid steps when there is enough work (v7x has 2 TCs and the
    # "parallel" grid axis is how they get sharded).
    bp = _cdiv(B, g)
    n_blocks = max(1, _cdiv(bp, tile_b))
    if bp >= 16:
        n_blocks = max(2, n_blocks)
    tb = _round_up(_cdiv(bp, n_blocks), 8)
    n_blocks = _cdiv(bp, tb)
    bp_pad = n_blocks * tb

    # Pack g consecutive samples per row (lane axis).  No 128-lane zero padding
    # of the input is materialized.
    x_packed = (
        jnp.zeros((bp_pad * g, dim_in), jnp.float32)
        .at[:B]
        .set(x.astype(jnp.float32))
        .reshape(bp_pad, in_w)
    )

    in_specs = [pl.BlockSpec((tb, in_w), lambda i: (i, 0))]
    for op in operands:
        # Constant index_map: weights/biases are fetched once and stay resident.
        in_specs.append(pl.BlockSpec(op.shape, lambda i: (0, 0)))

    # VMEM budget: double-buffered x/out blocks + resident weights + headroom.
    weight_bytes = sum(int(o.size) * 4 for o in operands)
    io_bytes = tb * (in_w + out_w) * 4
    act_bytes = 4 * tb * max(in_w, out_w, g * dim_hidden) * 4
    vmem_limit = int(
        min(48 << 20,
            max(32 << 20, 2 * (weight_bytes + io_bytes) + act_bytes + (4 << 20)))
    )

    out_packed = pl.pallas_call(
        _make_siren_kernel(num_layers),
        out_shape=jax.ShapeDtypeStruct((bp_pad, out_w), jnp.float32),
        grid=(n_blocks,),
        in_specs=in_specs,
        out_specs=pl.BlockSpec((tb, out_w), lambda i: (i, 0)),
        compiler_params=pltpu.CompilerParams(
            dimension_semantics=("parallel",),
            vmem_limit_bytes=vmem_limit,
        ),
    )(x_packed, *operands)

    # Unpack: packed row i holds samples [i*g, (i+1)*g) side by side.
    return out_packed.reshape(bp_pad * g, dim_out)[:B]


# ---------------------------------------------------------------------------
# Init (mimics the PyTorch Siren init_) and pure-JAX reference
# ---------------------------------------------------------------------------
def init_siren_params(key, dim_in, dim_hidden, dim_out, num_layers,
                      w0=1.0, w0_initial=30.0, c=6.0):
    hidden = []
    for ind in range(num_layers):
        is_first = ind == 0
        layer_dim_in = dim_in if is_first else dim_hidden
        layer_w0 = w0_initial if is_first else w0
        w_std = (1.0 / layer_dim_in) if is_first else (math.sqrt(c / layer_dim_in) / layer_w0)
        key, kw, kb = jax.random.split(key, 3)
        w = jax.random.uniform(kw, (dim_hidden, layer_dim_in), jnp.float32, -w_std, w_std)
        b = jax.random.uniform(kb, (dim_hidden,), jnp.float32, -w_std, w_std)
        hidden.append((w, b))
    w_std = math.sqrt(c / dim_hidden) / w0
    key, kw, kb = jax.random.split(key, 3)
    w = jax.random.uniform(kw, (dim_out, dim_hidden), jnp.float32, -w_std, w_std)
    b = jax.random.uniform(kb, (dim_out,), jnp.float32, -w_std, w_std)
    return {"hidden": hidden, "last": (w, b)}


def _reference_forward(x, params, w0=1.0, w0_initial=30.0):
    h = x
    for ind, (w, b) in enumerate(params["hidden"]):
        layer_w0 = w0_initial if ind == 0 else w0
        y = jnp.dot(h, w.T, precision=jax.lax.Precision.HIGHEST) + b
        h = jnp.sin(layer_w0 * y)
    w, b = params["last"]
    return jnp.dot(h, w.T, precision=jax.lax.Precision.HIGHEST) + b


if __name__ == "__main__":
    # Small SIREN: 2-D coordinates -> RGB, 3 sine layers of width 32.
    batch = 64
    dim_in = 2
    dim_hidden = 32
    dim_out = 3
    num_layers = 3
    w0, w0_initial = 1.0, 30.0

    key = jax.random.PRNGKey(0)
    kx, kp = jax.random.split(key)
    x = jax.random.uniform(kx, (batch, dim_in), jnp.float32, -1.0, 1.0)
    params = init_siren_params(kp, dim_in, dim_hidden, dim_out, num_layers,
                               w0=w0, w0_initial=w0_initial)

    # One-time parameter prep (transpose + w0-fold + block-diagonal packing).
    prepared = prepare_siren_params(params, w0=w0, w0_initial=w0_initial)

    out = siren_net_forward(x, prepared)
    out = jax.block_until_ready(out)

    ref = _reference_forward(x, params, w0=w0, w0_initial=w0_initial)
    assert out.shape == (batch, dim_out)
    max_err = float(jnp.max(jnp.abs(out - ref)))
    assert max_err < 2e-4, max_err

    print("KERNEL_OK")
</pallas_src>

<mosaic_0001>
module attributes {stable_mosaic.version = 11 : i64} {
  func.func @kernel(%arg0: i32, %arg1: memref<8x8xf32, #tpu.memory_space<vmem>>, %arg2: memref<8x128xf32, #tpu.memory_space<vmem>>, %arg3: memref<1x128xf32, #tpu.memory_space<vmem>>, %arg4: memref<128x128xf32, #tpu.memory_space<vmem>>, %arg5: memref<1x128xf32, #tpu.memory_space<vmem>>, %arg6: memref<128x128xf32, #tpu.memory_space<vmem>>, %arg7: memref<1x128xf32, #tpu.memory_space<vmem>>, %arg8: memref<128x12xf32, #tpu.memory_space<vmem>>, %arg9: memref<1x12xf32, #tpu.memory_space<vmem>>, %arg10: memref<8x12xf32, #tpu.memory_space<vmem>>) attributes {dimension_semantics = [#tpu.dimension_semantics<parallel>], iteration_bounds = array<i64: 2>, scalar_prefetch = 0 : i64, scratch_operands = 0 : i64, tpu.core_type = #tpu.core_type<tc>, window_params = [{transform_indices = @transform_0, window_bounds = array<i64: 8, 8>}, {pipeline_mode = #tpu.pipeline_mode<synchronous>, transform_indices = @transform_1, window_bounds = array<i64: 8, 128>}, {pipeline_mode = #tpu.pipeline_mode<synchronous>, transform_indices = @transform_2, window_bounds = array<i64: 1, 128>}, {pipeline_mode = #tpu.pipeline_mode<synchronous>, transform_indices = @transform_3, window_bounds = array<i64: 128, 128>}, {pipeline_mode = #tpu.pipeline_mode<synchronous>, transform_indices = @transform_4, window_bounds = array<i64: 1, 128>}, {pipeline_mode = #tpu.pipeline_mode<synchronous>, transform_indices = @transform_5, window_bounds = array<i64: 128, 128>}, {pipeline_mode = #tpu.pipeline_mode<synchronous>, transform_indices = @transform_6, window_bounds = array<i64: 1, 128>}, {pipeline_mode = #tpu.pipeline_mode<synchronous>, transform_indices = @transform_7, window_bounds = array<i64: 128, 12>}, {pipeline_mode = #tpu.pipeline_mode<synchronous>, transform_indices = @transform_8, window_bounds = array<i64: 1, 12>}, {transform_indices = @transform_9, window_bounds = array<i64: 8, 12>}]} {
    %c0 = arith.constant 0 : index
    %c0_0 = arith.constant 0 : index
    %0 = vector.load %arg1[%c0, %c0_0] : memref<8x8xf32, #tpu.memory_space<vmem>>, vector<8x8xf32>
    %c0_1 = arith.constant 0 : index
    %c0_2 = arith.constant 0 : index
    %1 = vector.load %arg2[%c0_1, %c0_2] : memref<8x128xf32, #tpu.memory_space<vmem>>, vector<8x128xf32>
    %c0_3 = arith.constant 0 : index
    %c0_4 = arith.constant 0 : index
    %2 = vector.load %arg3[%c0_3, %c0_4] : memref<1x128xf32, #tpu.memory_space<vmem>>, vector<1x128xf32>
    %cst = arith.constant dense<0.000000e+00> : vector<8x128xf32>
    %3 = tpu.matmul %0, %1, %cst {dimension_numbers = #tpu.dot_dimension_numbers<[1], [0], [0], [1], [0, 0, 1, 1], [], []>} : vector<8x8xf32>, vector<8x128xf32>, vector<8x128xf32> -> vector<8x128xf32>
    %4 = vector.broadcast %2 : vector<1x128xf32> to vector<8x128xf32>
    %5 = arith.addf %3, %4 : vector<8x128xf32>
    %6 = math.sin %5 : vector<8x128xf32>
    %c0_5 = arith.constant 0 : index
    %c0_6 = arith.constant 0 : index
    %7 = vector.load %arg4[%c0_5, %c0_6] : memref<128x128xf32, #tpu.memory_space<vmem>>, vector<128x128xf32>
    %c0_7 = arith.constant 0 : index
    %c0_8 = arith.constant 0 : index
    %8 = vector.load %arg5[%c0_7, %c0_8] : memref<1x128xf32, #tpu.memory_space<vmem>>, vector<1x128xf32>
    %cst_9 = arith.constant dense<0.000000e+00> : vector<8x128xf32>
    %9 = tpu.matmul %6, %7, %cst_9 {dimension_numbers = #tpu.dot_dimension_numbers<[1], [0], [0], [1], [0, 0, 1, 1], [], []>} : vector<8x128xf32>, vector<128x128xf32>, vector<8x128xf32> -> vector<8x128xf32>
    %10 = vector.broadcast %8 : vector<1x128xf32> to vector<8x128xf32>
    %11 = arith.addf %9, %10 : vector<8x128xf32>
    %12 = math.sin %11 : vector<8x128xf32>
    %c0_10 = arith.constant 0 : index
    %c0_11 = arith.constant 0 : index
    %13 = vector.load %arg6[%c0_10, %c0_11] : memref<128x128xf32, #tpu.memory_space<vmem>>, vector<128x128xf32>
    %c0_12 = arith.constant 0 : index
    %c0_13 = arith.constant 0 : index
    %14 = vector.load %arg7[%c0_12, %c0_13] : memref<1x128xf32, #tpu.memory_space<vmem>>, vector<1x128xf32>
    %cst_14 = arith.constant dense<0.000000e+00> : vector<8x128xf32>
    %15 = tpu.matmul %12, %13, %cst_14 {dimension_numbers = #tpu.dot_dimension_numbers<[1], [0], [0], [1], [0, 0, 1, 1], [], []>} : vector<8x128xf32>, vector<128x128xf32>, vector<8x128xf32> -> vector<8x128xf32>
    %16 = vector.broadcast %14 : vector<1x128xf32> to vector<8x128xf32>
    %17 = arith.addf %15, %16 : vector<8x128xf32>
    %18 = math.sin %17 : vector<8x128xf32>
    %c0_15 = arith.constant 0 : index
    %c0_16 = arith.constant 0 : index
    %19 = vector.load %arg8[%c0_15, %c0_16] : memref<128x12xf32, #tpu.memory_space<vmem>>, vector<128x12xf32>
    %c0_17 = arith.constant 0 : index
    %c0_18 = arith.constant 0 : index
    %20 = vector.load %arg9[%c0_17, %c0_18] : memref<1x12xf32, #tpu.memory_space<vmem>>, vector<1x12xf32>
    %cst_19 = arith.constant dense<0.000000e+00> : vector<8x12xf32>
    %21 = tpu.matmul %18, %19, %cst_19 {dimension_numbers = #tpu.dot_dimension_numbers<[1], [0], [0], [1], [0, 0, 1, 1], [], []>} : vector<8x128xf32>, vector<128x12xf32>, vector<8x12xf32> -> vector<8x12xf32>
    %22 = vector.broadcast %20 : vector<1x12xf32> to vector<8x12xf32>
    %23 = arith.addf %21, %22 : vector<8x12xf32>
    %c0_20 = arith.constant 0 : index
    %c0_21 = arith.constant 0 : index
    %24 = vector.load %arg10[%c0_20, %c0_21] : memref<8x12xf32, #tpu.memory_space<vmem>>, vector<8x12xf32>
    tpu.vector_store %arg10[%c0_20, %c0_21], %23 {strides = array<i32>} : memref<8x12xf32, #tpu.memory_space<vmem>>, vector<8x12xf32>,
    return
  }
  func.func @transform_0(%arg0: i32) -> (i32, i32) {
    %c0_i32 = arith.constant 0 : i32
    %c0_i32_0 = arith.constant 0 : i32
    return %arg0, %c0_i32 : i32, i32
  }
  func.func @transform_1(%arg0: i32) -> (i32, i32) {
    %c0_i32 = arith.constant 0 : i32
    %c0_i32_0 = arith.constant 0 : i32
    %c0_i32_1 = arith.constant 0 : i32
    return %c0_i32, %c0_i32_0 : i32, i32
  }
  func.func @transform_2(%arg0: i32) -> (i32, i32) {
    %c0_i32 = arith.constant 0 : i32
    %c0_i32_0 = arith.constant 0 : i32
    %c0_i32_1 = arith.constant 0 : i32
    return %c0_i32, %c0_i32_0 : i32, i32
  }
  func.func @transform_3(%arg0: i32) -> (i32, i32) {
    %c0_i32 = arith.constant 0 : i32
    %c0_i32_0 = arith.constant 0 : i32
    %c0_i32_1 = arith.constant 0 : i32
    return %c0_i32, %c0_i32_0 : i32, i32
  }
  func.func @transform_4(%arg0: i32) -> (i32, i32) {
    %c0_i32 = arith.constant 0 : i32
    %c0_i32_0 = arith.constant 0 : i32
    %c0_i32_1 = arith.constant 0 : i32
    return %c0_i32, %c0_i32_0 : i32, i32
  }
  func.func @transform_5(%arg0: i32) -> (i32, i32) {
    %c0_i32 = arith.constant 0 : i32
    %c0_i32_0 = arith.constant 0 : i32
    %c0_i32_1 = arith.constant 0 : i32
    return %c0_i32, %c0_i32_0 : i32, i32
  }
  func.func @transform_6(%arg0: i32) -> (i32, i32) {
    %c0_i32 = arith.constant 0 : i32
    %c0_i32_0 = arith.constant 0 : i32
    %c0_i32_1 = arith.constant 0 : i32
    return %c0_i32, %c0_i32_0 : i32, i32
  }
  func.func @transform_7(%arg0: i32) -> (i32, i32) {
    %c0_i32 = arith.constant 0 : i32
    %c0_i32_0 = arith.constant 0 : i32
    %c0_i32_1 = arith.constant 0 : i32
    return %c0_i32, %c0_i32_0 : i32, i32
  }
  func.func @transform_8(%arg0: i32) -> (i32, i32) {
    %c0_i32 = arith.constant 0 : i32
    %c0_i32_0 = arith.constant 0 : i32
    %c0_i32_1 = arith.constant 0 : i32
    return %c0_i32, %c0_i32_0 : i32, i32
  }
  func.func @transform_9(%arg0: i32) -> (i32, i32) {
    %c0_i32 = arith.constant 0 : i32
    %c0_i32_0 = arith.constant 0 : i32
    return %arg0, %c0_i32 : i32, i32
  }
}

</mosaic_0001>

<llo_original>
// kernel: tpu_custom_call.1
$region0: #{tpu_custom_call.1}
  #allocation0 [shape = 'u32[]', space=smem, size = 0x4, offset = 0x4, fixed_abs, tag = 'smem constant byte address 0x4 - core index']
  #allocation1 [shape = 'u32[144,128]{1,0:T(1,128)}', space=vmem, size = 0x12000, scoped, tag = 'internal scratch']
  %s0 = inlined_call_operand.vmem [shape: f32[16,8], index: 0, kind: input, shape index: {}]
  %s1 = inlined_call_operand.vmem [shape: f32[8,128], index: 1, kind: input, shape index: {}]
  %s2 = inlined_call_operand.vmem [shape: f32[1,128], index: 2, kind: input, shape index: {}]
  %s3 = inlined_call_operand.vmem [shape: f32[128,128], index: 3, kind: input, shape index: {}]
  %s4 = inlined_call_operand.vmem [shape: f32[1,128], index: 4, kind: input, shape index: {}]
  %s5 = inlined_call_operand.hbm [shape: f32[128,128], index: 5, kind: input, shape index: {}]
  %s6 = inlined_call_operand.vmem [shape: f32[1,128], index: 6, kind: input, shape index: {}]
  %s7 = inlined_call_operand.vmem [shape: f32[128,12], index: 7, kind: input, shape index: {}]
  %s8 = inlined_call_operand.vmem [shape: f32[1,12], index: 8, kind: input, shape index: {}]
  %s9 = inlined_call_operand.hbm [shape: f32[16,12], index: 9, kind: output, shape index: {}]
  %s10 = sld [smem:[#allocation0]]
  $region73: #{tpu_custom_call.1} parent=0
    _
  %s12 = ssub.s32 1, %s10
  %s13 = scalar_select 0, %s12, %s10
  $region1: #{tpu_custom_call.1} parent=0
    #allocation2 [shape = 'u8[65536]{0}', space=vmem, size = 0x10000, scoped, tag = 'input window, operand 5, single buffered']
    #allocation3 [shape = 's32[2]{0}', space=sflag, size = 0x8, scoped, tag = 'scoped memory for tpu_custom_call.1']
    #allocation4 [shape = 's32[2]{0}', space=sflag, size = 0x8, scoped, tag = 'scoped memory for tpu_custom_call.1']
    #allocation5 [shape = 'u8[8192]{0}', space=vmem, size = 0x2000, scoped, tag = 'output window, operand 0']
    %14 = vsyncpa [#allocation3], 0
    %15 = vsyncpa [#allocation4], 0
    %s16 = scalar_lea.sflag [#allocation4], 1
    %17 = vsyncpa %s16, 0
    loop: start=0, step=1, limit=4
    $region2: #{tpu_custom_call.1} parent=1 // loop_pre_header
      _
    $region3: #{tpu_custom_call.1} parent=1 // loop_header
      %s19 = sphi 0, %s23
      %p20 = scmp.ge.s32.totalorder %s19, 4
      %s29 = sphi 0, %s31
      %s32 = sphi 0, %s29
      %s33 = sphi 0, %s32
      %s49 = sphi 0, %s33
      %s53 = sphi 0, %s53
      %s55 = sphi 0, %s53
      %s56 = sphi 0, %s55
      %s70 = sphi 0, %s56
      %s74 = sphi 0, %s74
      %s76 = sphi 0, %s74
      %s77 = sphi 0, %s76
      %s91 = sphi 0, %s77
      %s95 = sphi 0, %s95
      %s97 = sphi 0, %s95
      %s98 = sphi 0, %s97
      %s112 = sphi 0, %s98
      %s116 = sphi 0, %s116
      %s118 = sphi 0, %s116
      %s119 = sphi 0, %s118
      %s133 = sphi 0, %s119
      %s137 = sphi 0, %s137
      %s139 = sphi 0, %s137
      %s140 = sphi 0, %s139
      %s154 = sphi 0, %s140
      %s158 = sphi 0, %s158
      %s160 = sphi 0, %s158
      %s161 = sphi 0, %s160
      %s175 = sphi 0, %s161
      %s179 = sphi 0, %s179
      %s181 = sphi 0, %s179
      %s182 = sphi 0, %s181
      %s196 = sphi 0, %s182
      %s200 = sphi 0, %s200
      %s202 = sphi 0, %s200
      %s203 = sphi 0, %s202
      %s217 = sphi 0, %s203
      %s223 = sphi 0, %s225
      %s226 = sphi 0, %s223
      %s227 = sphi 0, %s226
      %s243 = sphi 0, %s227
    $region4: #{tpu_custom_call.1} parent=1 // loop_header_branch
      %22 = sbr.rel (%p20) target = $region8
    $region5: #{tpu_custom_call.1} parent=1 // loop_body
      %s24 = ssub.s32 %s19, 1
      %s25 = ssub.s32 %s19, 2
      %s26 = sadd.s32 %s19, 1
      %s27 = ssub.s32 %s19, %s26
      %p28 = scmp.eq.s32.totalorder %s27, 0
      %s30 = sadd.s32 %s29, 1
      %s31 = scalar_select %p28, %s29, %s30
      %p34 = pneg %p28
      %p35 = scmp.eq.s32.totalorder %s19, 1
      %p36 = por %p34, %p35
      %p37 = scmp.ne.s32.totalorder %s29, %s32
      %p38 = scmp.eq.s32.totalorder %s19, 0
      %p39 = por %p37, %p38
      %p40 = scmp.ne.s32.totalorder %s29, %s32
      %p41 = scmp.eq.s32.totalorder %s24, 1
      %p42 = por %p40, %p41
      %p43 = scmp.ne.s32.totalorder %s32, %s33
      %p44 = scmp.eq.s32.totalorder %s24, 0
      %p45 = por %p43, %p44
      %p46 = scmp.ne.s32.totalorder %s32, %s33
      %p47 = scmp.eq.s32.totalorder %s25, 1
      %p48 = por %p46, %p47
      %p50 = scmp.ne.s32.totalorder %s33, %s49
      %p51 = scmp.eq.s32.totalorder %s25, 0
      %p52 = por %p50, %p51
      %s54 = sadd.s32 %s53, 1
      %p57 = scmp.eq.s32.totalorder %s19, 1
      %p58 = scmp.ne.s32.totalorder %s53, %s55
      %p59 = scmp.eq.s32.totalorder %s19, 0
      %p60 = por %p58, %p59
      %p61 = scmp.ne.s32.totalorder %s53, %s55
      %p62 = scmp.eq.s32.totalorder %s24, 1
      %p63 = por %p61, %p62
      %p64 = scmp.ne.s32.totalorder %s55, %s56
      %p65 = scmp.eq.s32.totalorder %s24, 0
      %p66 = por %p64, %p65
      %p67 = scmp.ne.s32.totalorder %s55, %s56
      %p68 = scmp.eq.s32.totalorder %s25, 1
      %p69 = por %p67, %p68
      %p71 = scmp.ne.s32.totalorder %s56, %s70
      %p72 = scmp.eq.s32.totalorder %s25, 0
      %p73 = por %p71, %p72
      %s75 = sadd.s32 %s74, 1
      %p78 = scmp.eq.s32.totalorder %s19, 1
      %p79 = scmp.ne.s32.totalorder %s74, %s76
      %p80 = scmp.eq.s32.totalorder %s19, 0
      %p81 = por %p79, %p80
      %p82 = scmp.ne.s32.totalorder %s74, %s76
      %p83 = scmp.eq.s32.totalorder %s24, 1
      %p84 = por %p82, %p83
      %p85 = scmp.ne.s32.totalorder %s76, %s77
      %p86 = scmp.eq.s32.totalorder %s24, 0
      %p87 = por %p85, %p86
      %p88 = scmp.ne.s32.totalorder %s76, %s77
      %p89 = scmp.eq.s32.totalorder %s25, 1
      %p90 = por %p88, %p89
      %p92 = scmp.ne.s32.totalorder %s77, %s91
      %p93 = scmp.eq.s32.totalorder %s25, 0
      %p94 = por %p92, %p93
      %s96 = sadd.s32 %s95, 1
      %p99 = scmp.eq.s32.totalorder %s19, 1
      %p100 = scmp.ne.s32.totalorder %s95, %s97
      %p101 = scmp.eq.s32.totalorder %s19, 0
      %p102 = por %p100, %p101
      %p103 = scmp.ne.s32.totalorder %s95, %s97
      %p104 = scmp.eq.s32.totalorder %s24, 1
      %p105 = por %p103, %p104
      %p106 = scmp.ne.s32.totalorder %s97, %s98
      %p107 = scmp.eq.s32.totalorder %s24, 0
      %p108 = por %p106, %p107
      %p109 = scmp.ne.s32.totalorder %s97, %s98
      %p110 = scmp.eq.s32.totalorder %s25, 1
      %p111 = por %p109, %p110
      %p113 = scmp.ne.s32.totalorder %s98, %s112
      %p114 = scmp.eq.s32.totalorder %s25, 0
      %p115 = por %p113, %p114
      %s117 = sadd.s32 %s116, 1
      %p120 = scmp.eq.s32.totalorder %s19, 1
      %p121 = scmp.ne.s32.totalorder %s116, %s118
      %p122 = scmp.eq.s32.totalorder %s19, 0
      %p123 = por %p121, %p122
      %p124 = scmp.ne.s32.totalorder %s116, %s118
      %p125 = scmp.eq.s32.totalorder %s24, 1
      %p126 = por %p124, %p125
      %p127 = scmp.ne.s32.totalorder %s118, %s119
      %p128 = scmp.eq.s32.totalorder %s24, 0
      %p129 = por %p127, %p128
      %p130 = scmp.ne.s32.totalorder %s118, %s119
      %p131 = scmp.eq.s32.totalorder %s25, 1
      %p132 = por %p130, %p131
      %p134 = scmp.ne.s32.totalorder %s119, %s133
      %p135 = scmp.eq.s32.totalorder %s25, 0
      %p136 = por %p134, %p135
      %s138 = sadd.s32 %s137, 1
      %p141 = scmp.eq.s32.totalorder %s19, 1
      %p142 = scmp.ne.s32.totalorder %s137, %s139
      %p143 = scmp.eq.s32.totalorder %s19, 0
      %p144 = por %p142, %p143
      %p145 = scmp.ne.s32.totalorder %s137, %s139
      %p146 = scmp.eq.s32.totalorder %s24, 1
      %p147 = por %p145, %p146
      %p148 = scmp.ne.s32.totalorder %s139, %s140
      %p149 = scmp.eq.s32.totalorder %s24, 0
      %p150 = por %p148, %p149
      %p151 = scmp.ne.s32.totalorder %s139, %s140
      %p152 = scmp.eq.s32.totalorder %s25, 1
      %p153 = por %p151, %p152
      %p155 = scmp.ne.s32.totalorder %s140, %s154
      %p156 = scmp.eq.s32.totalorder %s25, 0
      %p157 = por %p155, %p156
      %s159 = sadd.s32 %s158, 1
      %p162 = scmp.eq.s32.totalorder %s19, 1
      %p163 = scmp.ne.s32.totalorder %s158, %s160
      %p164 = scmp.eq.s32.totalorder %s19, 0
      %p165 = por %p163, %p164
      %p166 = scmp.ne.s32.totalorder %s158, %s160
      %p167 = scmp.eq.s32.totalorder %s24, 1
      %p168 = por %p166, %p167
      %p169 = scmp.ne.s32.totalorder %s160, %s161
      %p170 = scmp.eq.s32.totalorder %s24, 0
      %p171 = por %p169, %p170
      %p172 = scmp.ne.s32.totalorder %s160, %s161
      %p173 = scmp.eq.s32.totalorder %s25, 1
      %p174 = por %p172, %p173
      %p176 = scmp.ne.s32.totalorder %s161, %s175
      %p177 = scmp.eq.s32.totalorder %s25, 0
      %p178 = por %p176, %p177
      %s180 = sadd.s32 %s179, 1
      %p183 = scmp.eq.s32.totalorder %s19, 1
      %p184 = scmp.ne.s32.totalorder %s179, %s181
      %p185 = scmp.eq.s32.totalorder %s19, 0
      %p186 = por %p184, %p185
      %p187 = scmp.ne.s32.totalorder %s179, %s181
      %p188 = scmp.eq.s32.totalorder %s24, 1
      %p189 = por %p187, %p188
      %p190 = scmp.ne.s32.totalorder %s181, %s182
      %p191 = scmp.eq.s32.totalorder %s24, 0
      %p192 = por %p190, %p191
      %p193 = scmp.ne.s32.totalorder %s181, %s182
      %p194 = scmp.eq.s32.totalorder %s25, 1
      %p195 = por %p193, %p194
      %p197 = scmp.ne.s32.totalorder %s182, %s196
      %p198 = scmp.eq.s32.totalorder %s25, 0
      %p199 = por %p197, %p198
      %s201 = sadd.s32 %s200, 1
      %p204 = scmp.eq.s32.totalorder %s19, 1
      %p205 = scmp.ne.s32.totalorder %s200, %s202
      %p206 = scmp.eq.s32.totalorder %s19, 0
      %p207 = por %p205, %p206
      %p208 = scmp.ne.s32.totalorder %s200, %s202
      %p209 = scmp.eq.s32.totalorder %s24, 1
      %p210 = por %p208, %p209
      %p211 = scmp.ne.s32.totalorder %s202, %s203
      %p212 = scmp.eq.s32.totalorder %s24, 0
      %p213 = por %p211, %p212
      %p214 = scmp.ne.s32.totalorder %s202, %s203
      %p215 = scmp.eq.s32.totalorder %s25, 1
      %p216 = por %p214, %p215
      %p218 = scmp.ne.s32.totalorder %s203, %s217
      %p219 = scmp.eq.s32.totalorder %s25, 0
      %p220 = por %p218, %p219
      %s221 = ssub.s32 %s19, %s26
      %p222 = scmp.eq.s32.totalorder %s221, 0
      %s224 = sadd.s32 %s223, 1
      %s225 = scalar_select %p222, %s223, %s224
      %p228 = pneg %p222
      %p229 = scmp.eq.s32.totalorder %s19, 1
      %p230 = por %p228, %p229
      %p231 = scmp.ne.s32.totalorder %s223, %s226
      %p232 = scmp.eq.s32.totalorder %s19, 0
      %p233 = por %p231, %p232
      %p234 = scmp.ne.s32.totalorder %s223, %s226
      %p235 = scmp.eq.s32.totalorder %s24, 1
      %p236 = por %p234, %p235
      %p237 = scmp.ne.s32.totalorder %s226, %s227
      %p238 = scmp.eq.s32.totalorder %s24, 0
      %p239 = por %p237, %p238
      %p240 = scmp.ne.s32.totalorder %s226, %s227
      %p241 = scmp.eq.s32.totalorder %s25, 1
      %p242 = por %p240, %p241
      %p244 = scmp.ne.s32.totalorder %s227, %s243
      %p245 = scmp.eq.s32.totalorder %s25, 0
      %p246 = por %p244, %p245
      %p247 = scmp.le.s32.totalorder 1, %s19
      %p248 = scmp.lt.s32.totalorder %s19, 3
      %p249 = pnand %p247, %p248
      %p250 = pneg %p249
      // Predicated region
      $region9: #{tpu_custom_call.1} parent=5 // pred_check
        _
      $region10: #{tpu_custom_call.1} parent=5 // pred_check_branch
        %252 = sbr.rel (%p249) target = $region12
      $region11: #{tpu_custom_call.1} parent=5 // pred_region
        %s253 = ssub.s32 %s19, 1
        // Predicated region
        $region13: #{tpu_custom_call.1} parent=11 // pred_check
          %p254 = pneg %p66
        $region14: #{tpu_custom_call.1} parent=11 // pred_check_branch
          %256 = sbr.rel (%p254) target = $region16
        $region15: #{tpu_custom_call.1} parent=11 // pred_region
          _
        $region16: #{tpu_custom_call.1} parent=11 // pred_fallthru
          _
        // Predicated region
        $region17: #{tpu_custom_call.1} parent=11 // pred_check
          %p257 = pneg %p87
        $region18: #{tpu_custom_call.1} parent=11 // pred_check_branch
          %259 = sbr.rel (%p257) target = $region20
        $region19: #{tpu_custom_call.1} parent=11 // pred_region
          _
        $region20: #{tpu_custom_call.1} parent=11 // pred_fallthru
          _
        // Predicated region
        $region21: #{tpu_custom_call.1} parent=11 // pred_check
          %p260 = pneg %p108
        $region22: #{tpu_custom_call.1} parent=11 // pred_check_branch
          %262 = sbr.rel (%p260) target = $region24
        $region23: #{tpu_custom_call.1} parent=11 // pred_region
          _
        $region24: #{tpu_custom_call.1} parent=11 // pred_fallthru
          _
        // Predicated region
        $region25: #{tpu_custom_call.1} parent=11 // pred_check
          %p263 = pneg %p129
        $region26: #{tpu_custom_call.1} parent=11 // pred_check_branch
          %265 = sbr.rel (%p263) target = $region28
        $region27: #{tpu_custom_call.1} parent=11 // pred_region
          _
        $region28: #{tpu_custom_call.1} parent=11 // pred_fallthru
          _
        // Predicated region
        $region29: #{tpu_custom_call.1} parent=11 // pred_check
          %p266 = pneg %p150
        $region30: #{tpu_custom_call.1} parent=11 // pred_check_branch
          %268 = sbr.rel (%p266) target = $region32
        $region31: #{tpu_custom_call.1} parent=11 // pred_region
          %s270 = ssub.s32 2048, 2048
          %271 = vsyncadd [#allocation3], %s270
          %s272 = sshll.u32 [#allocation2], 4
          %s273 = int_to_ptr.vmem [resolvable:$true] %s272
          %278 = dma.hbm_to_vmem [thread:$0]  %s5, 2048, %s273, [#allocation3], 128, 128, 8
        $region32: #{tpu_custom_call.1} parent=11 // pred_fallthru
          _
        // Predicated region
        $region33: #{tpu_custom_call.1} parent=11 // pred_check
          %p279 = pneg %p171
        $region34: #{tpu_custom_call.1} parent=11 // pred_check_branch
          %281 = sbr.rel (%p279) target = $region36
        $region35: #{tpu_custom_call.1} parent=11 // pred_region
          _
        $region36: #{tpu_custom_call.1} parent=11 // pred_fallthru
          _
        // Predicated region
        $region37: #{tpu_custom_call.1} parent=11 // pred_check
          %p282 = pneg %p192
        $region38: #{tpu_custom_call.1} parent=11 // pred_check_branch
          %284 = sbr.rel (%p282) target = $region40
        $region39: #{tpu_custom_call.1} parent=11 // pred_region
          _
        $region40: #{tpu_custom_call.1} parent=11 // pred_fallthru
          _
        // Predicated region
        $region41: #{tpu_custom_call.1} parent=11 // pred_check
          %p285 = pneg %p213
        $region42: #{tpu_custom_call.1} parent=11 // pred_check_branch
          %287 = sbr.rel (%p285) target = $region44
        $region43: #{tpu_custom_call.1} parent=11 // pred_region
          _
        $region44: #{tpu_custom_call.1} parent=11 // pred_fallthru
          _
      $region12: #{tpu_custom_call.1} parent=5 // pred_fallthru
        _
      %p288 = scmp.lt.s32.totalorder %s19, 2
      // Predicated region
      $region45: #{tpu_custom_call.1} parent=5 // pred_check
        %p289 = pneg %p288
      $region46: #{tpu_custom_call.1} parent=5 // pred_check_branch
        %291 = sbr.rel (%p289) target = $region48
      $region47: #{tpu_custom_call.1} parent=5 // pred_region
        // Predicated region
        $region49: #{tpu_custom_call.1} parent=47 // pred_check
          %p292 = pneg %p39
        $region50: #{tpu_custom_call.1} parent=47 // pred_check_branch
          %294 = sbr.rel (%p292) target = $region52
        $region51: #{tpu_custom_call.1} parent=47 // pred_region
          %p295 = scmp.lt.s32.totalorder %s19, 1
          %s296 = scalar_select %p295, %s19, 1
          %s297 = smul.addr %s296, 8
          %s298 = scalar_lea.vmem %s0, %s297
        $region52: #{tpu_custom_call.1} parent=47 // pred_fallthru
          _
      $region48: #{tpu_custom_call.1} parent=5 // pred_fallthru
        _
      %p299 = scmp.le.s32.totalorder 1, %s19
      %p300 = scmp.lt.s32.totalorder %s19, 3
      %p301 = pnand %p299, %p300
      %p302 = pneg %p301
      // Predicated region
      $region53: #{tpu_custom_call.1} parent=5 // pred_check
        _
      $region54: #{tpu_custom_call.1} parent=5 // pred_check_branch
        %304 = sbr.rel (%p301) target = $region56
      $region55: #{tpu_custom_call.1} parent=5 // pred_region
        %s305 = ssub.s32 %s19, 1
        // Predicated region
        $region57: #{tpu_custom_call.1} parent=55 // pred_check
          %p306 = pneg %p150
        $region58: #{tpu_custom_call.1} parent=55 // pred_check_branch
          %308 = sbr.rel (%p306) target = $region60
        $region59: #{tpu_custom_call.1} parent=55 // pred_region
          %309 = dma.done [#allocation3], 2048
        $region60: #{tpu_custom_call.1} parent=55 // pred_fallthru
          _
        %p310 = scmp.lt.s32.totalorder %s24, 1
        %s311 = scalar_select %p310, %s24, 1
        %s312 = smul.addr %s311, 8
        %s313 = scalar_lea.vmem %s0, %s312
        %p314 = pneg %p45
        %p315 = pneg %p42
        %p316 = pneg %p66
        %p317 = pneg %p63
        %p318 = pneg %p87
        %p319 = pneg %p84
        %p320 = pneg %p108
        %p321 = pneg %p105
        %p322 = pneg %p129
        %p323 = pneg %p126
        %p324 = pneg %p150
        %p325 = pneg %p147
        %p326 = pneg %p171
        %p327 = pneg %p168
        %p328 = pneg %p192
        %p329 = pneg %p189
        %p330 = pneg %p213
        %p331 = pneg %p210
        %p332 = pneg %p239
        %p333 = pneg %p236
        %s334 = sand.u32 %s226, 1
        %s335 = scalar_lea.sflag [#allocation4], %s334
        %s336 = sand.u32 %s226, 1
        %s337 = smul.addr %s336, 8
        %s338 = scalar_lea.vmem [#allocation5], %s337
        %p339 = scmp.lt.s32.totalorder %s24, 1
        %s340 = scalar_select %p339, %s24, 1
        %s341 = smul.addr %s340, 8
        %s342 = scalar_lea.vmem %s0, %s341
        %v343 = vld [vmem:[%s342] sm:$0xff]
        %v344 = vld [vmem:[%s1] sm:$0xff]
        %v345 = vld [vmem:[%s2] sm:$0x1]
        %v347 = vlaneseq
        %v348 = vshrl.u32 %v347, 7
        %v349 = vsub.s32 0, %v348
        %v350 = vrot.slane %v345, %v349
        %vm352 = vcmask 64512
        %v354 = vsel %vm352, %v343, 0
        %356 = vmatprep.subr.mxu0 0.0
        %357 = vmatpush1.msra.mxu0 0.0
        %358 = vmatprep.subr.mxu0 0.0
        %359 = vmatpush1.msra.mxu0 0.0
        %360 = vmatprep.subr.mxu0 0.0
        %361 = vmatpush1.msra.mxu0 0.0
        %362 = vmatprep.subr.mxu0 0.0
        %363 = vmatpush1.msra.mxu0 0.0
        %364 = vmatprep.subr.mxu0 0.0
        %365 = vmatpush1.msra.mxu0 0.0
        %366 = vmatprep.subr.mxu0 0.0
        %367 = vmatpush1.msra.mxu0 0.0
        %368 = vmatprep.subr.mxu0 0.0
        %369 = vmatpush1.msra.mxu0 0.0
        %370 = vmatprep.subr.mxu0 0.0
        %371 = vmatpush1.msra.mxu0 0.0
        %372 = vmatprep.subr.mxu0 0.0
        %373 = vmatpush1.msra.mxu0 0.0
        %374 = vmatprep.subr.mxu0 0.0
        %375 = vmatpush1.msra.mxu0 0.0
        %376 = vmatprep.subr.mxu0 0.0
        %377 = vmatpush1.msra.mxu0 0.0
        %378 = vmatprep.subr.mxu0 0.0
        %379 = vmatpush1.msra.mxu0 0.0
        %380 = vmatprep.subr.mxu0 0.0
        %381 = vmatpush1.msra.mxu0 0.0
        %382 = vmatprep.subr.mxu0 0.0
        %383 = vmatpush1.msra.mxu0 0.0
        %384 = vmatprep.subr.mxu0 0.0
        %385 = vmatpush1.msra.mxu0 0.0
        %386 = vmatprep.subr.mxu0 0.0
        %387 = vmatpush1.msra.mxu0 %v344
        %388 = vmatprep.subr.mxu0 0.0
        %389 = vmatpush2.msra.mxu0 0.0
        %390 = vmatprep.subr.mxu0 0.0
        %391 = vmatpush2.msra.mxu0 0.0
        %392 = vmatprep.subr.mxu0 0.0
        %393 = vmatpush2.msra.mxu0 0.0
        %394 = vmatprep.subr.mxu0 0.0
        %395 = vmatpush2.msra.mxu0 0.0
        %396 = vmatprep.subr.mxu0 0.0
        %397 = vmatpush2.msra.mxu0 0.0
        %398 = vmatprep.subr.mxu0 0.0
        %399 = vmatpush2.msra.mxu0 0.0
        %400 = vmatprep.subr.mxu0 0.0
        %401 = vmatpush2.msra.mxu0 0.0
        %402 = vmatprep.subr.mxu0 0.0
        %403 = vmatpush2.msra.mxu0 0.0
        %404 = vmatprep.subr.mxu0 0.0
        %405 = vmatpush2.msra.mxu0 0.0
        %406 = vmatprep.subr.mxu0 0.0
        %407 = vmatpush2.msra.mxu0 0.0
        %408 = vmatprep.subr.mxu0 0.0
        %409 = vmatpush2.msra.mxu0 0.0
        %410 = vmatprep.subr.mxu0 0.0
        %411 = vmatpush2.msra.mxu0 0.0
        %412 = vmatprep.subr.mxu0 0.0
        %413 = vmatpush2.msra.mxu0 0.0
        %414 = vmatprep.subr.mxu0 0.0
        %415 = vmatpush2.msra.mxu0 0.0
        %416 = vmatprep.subr.mxu0 0.0
        %417 = vmatpush2.msra.mxu0 0.0
        %418 = vmatprep.subr.mxu0 0.0
        %419 = vmatpush2.msra.mxu0 0.0
        %420 = vmatprep.mubr.f32.mxu0 0.0
        %421 = vmatmul.mubr.f32.gmra.mxu0 %v354
        %v422 = vpop.f32.mrf.mxu0
        %v423 = vadd.f32 %v350, %v422
        %v424 = vpop.f32.mrf.mxu0
        %425 = vdwg.mxu0
        %v426 = vand.u32 2147483647, %v423
        %vm427 = vcmp.le.f32.partialorder %v426, 0.7853982
        %vm428 = vcmp.lt.s32.totalorder %v423, 0
        %v429 = vand.u32 %v423, 2139095040
        %v430 = vshrl.u32 %v429, 23
        %v431 = vsub.s32 %v430, 127
        %v432 = vand.u32 2147483647, %v423
        %v433 = vand.u32 %v432, 8388607
        %v434 = vor.u32 %v433, 8388608
        %v435 = vsub.s32 0, %v434
        %v436 = vadd.s32 %v431, 1
        %vm437 = vcmp.gt.s32.totalorder %v436, 0
        %v438 = vsel %vm437, %v436, 0
        %v439 = vshrl.u32 %v438, 5
        %v440 = vand.u32 %v438, 31
        %v441 = vsub.s32 32, %v440
        %v442 = vshrl.u32 683565275, %v441
        %v443 = vshll.u32 683565275, %v440
        %v444 = vshrl.u32 2475754826, %v441
        %v445 = vor.u32 %v443, %v444
        %v446 = vshll.u32 2475754826, %v440
        %v447 = vshrl.u32 2131351028, %v441
        %v448 = vor.u32 %v446, %v447
        %v449 = vshll.u32 2131351028, %v440
        %v450 = vshrl.u32 2102212464, %v441
        %v451 = vor.u32 %v449, %v450
        %v452 = vshll.u32 2102212464, %v440
        %v453 = vshrl.u32 920167782, %v441
        %v454 = vor.u32 %v452, %v453
        %v455 = vshll.u32 920167782, %v440
        %v456 = vshrl.u32 1326507024, %v441
        %v457 = vor.u32 %v455, %v456
        %vm458 = vcmp.lt.s32.totalorder %v439, 1
        %vm459 = vcmp.lt.s32.totalorder %v439, 2
        %vm460 = vcmp.lt.s32.totalorder %v439, 3
        %vm461 = vcmp.lt.s32.totalorder %v439, 4
        %v462 = vsel %vm458, %v442, %v445
        %v463 = vsel %vm461, %v451, 2102212464
        %v464 = vsel %vm460, %v448, %v463
        %v465 = vsel %vm459, %v462, %v464
        %v466 = vsel %vm458, %v445, %v448
        %v467 = vsel %vm461, %v454, 920167782
        %v468 = vsel %vm460, %v451, %v467
        %v469 = vsel %vm459, %v466, %v468
        %v470 = vsel %vm458, %v448, %v451
        %v471 = vsel %vm461, %v457, 1326507024
        %v472 = vsel %vm460, %v454, %v471
        %v473 = vsel %vm459, %v470, %v472
        %v474 = vshll.u32 %v434, 8
        %v475 = vmul.u32.u64.compose %v474, %v473
        %v476 = vextract.low.u32 %v475
        %v477 = vextract.high.u32 %v475
        %v478 = vmul.u32.u64.compose %v474, %v469
        %v479 = vextract.low.u32 %v478
        %v480 = vextract.high.u32 %v478
        %v481 = vmul.u32 %v474, %v465
        %v482 = vadd.s32 %v477, %v479
        %vm483 = vc.u32 %v477, %v479
        %v484 = vadd.s32 %v480, 1
        %v485 = vsel %vm483, %v484, %v480
        %v486 = vadd.s32 %v481, %v485
        %v487 = vadd.s32 %v486, 536870912
        %v488 = vshrl.u32 %v487, 30
        %v489 = vshll.u32 %v488, 30
        %v490 = vsub.s32 %v486, %v489
        %vm491 = vcmp.lt.s32.totalorder %v490, 0
        %v492 = vsub.s32 0, %v490
        %v493 = vsel %vm491, %v492, %v490
        %v494 = vclz %v493
        %v495 = vsub.s32 %v494, 2
        %vm496 = vcmp.gt.s32.totalorder 0, %v495
        %v497 = vsel %vm496, 0, %v495
        %v498 = vsub.s32 32, %v497
        %v499 = vshll.u32 %v490, %v497
        %v500 = vshrl.u32 %v482, %v498
        %v501 = vor.u32 %v499, %v500
        %v502 = vsub.s32 4294967266, %v497
        %v503 = vadd.s32 %v502, 127
        %v504 = vshll.u32 %v503, 23
        %v505 = vor.u32 4788187, %v504
        %v506 = vand.u32 2147483647, %v505
        %v508 = vcvt.s32.f32 %v501
        %v509 = vmul.f32 %v508, %v506
        %v510 = vxor.u32 %v509, 2147483648
        %v511 = vsel %vm428, %v510, %v509
        %v512 = vsub.s32 4, %v488
        %v513 = vsel %vm428, %v512, %v488
        %v514 = vsel %vm427, %v423, %v511
        %v515 = vsel %vm427, 0, %v513
        %v516 = vcosq.f32.pop %v514
        %v517 = vsinq.f32.pop %v514
        %vm518 = vweird.f32 %v423
        %v519 = vadd.s32 %v515, 3
        %v520 = vand.u32 %v519, 3
        %vm521 = vcmp.lt.s32.totalorder %v520, 2
        %vm522 = vcmp.eq.s32.totalorder %v520, 0
        %v523 = vxor.u32 %v517, 2147483648
        %v524 = vsel %vm522, %v516, %v523
        %vm525 = vcmp.eq.s32.totalorder %v520, 2
        %v526 = vxor.u32 %v516, 2147483648
        %v527 = vsel %vm525, %v526, %v517
        %v528 = vsel %vm521, %v524, %v527
        %v529 = vsel %vm518, nan, %v528
        %v530 = vld [vmem:[%s3] sm:$0xff]
        %v531 = vld [vmem:[%s3 + $0x8] sm:$0xff]
        %v532 = vld [vmem:[%s3 + $0x10] sm:$0xff]
        %v533 = vld [vmem:[%s3 + $0x18] sm:$0xff]
        %v534 = vld [vmem:[%s3 + $0x20] sm:$0xff]
        %v535 = vld [vmem:[%s3 + $0x28] sm:$0xff]
        %v536 = vld [vmem:[%s3 + $0x30] sm:$0xff]
        %v537 = vld [vmem:[%s3 + $0x38] sm:$0xff]
        %v538 = vld [vmem:[%s3 + $0x40] sm:$0xff]
        %v539 = vld [vmem:[%s3 + $0x48] sm:$0xff]
        %v540 = vld [vmem:[%s3 + $0x50] sm:$0xff]
        %v541 = vld [vmem:[%s3 + $0x58] sm:$0xff]
        %v542 = vld [vmem:[%s3 + $0x60] sm:$0xff]
        %v543 = vld [vmem:[%s3 + $0x68] sm:$0xff]
        %v544 = vld [vmem:[%s3 + $0x70] sm:$0xff]
        %v545 = vld [vmem:[%s3 + $0x78] sm:$0xff]
        %v546 = vld [vmem:[%s4] sm:$0x1]
        %v548 = vlaneseq
        %v549 = vshrl.u32 %v548, 7
        %v550 = vsub.s32 0, %v549
        %v551 = vrot.slane %v546, %v550
        %553 = vmatprep.subr.mxu0 0.0
        %554 = vmatpush1.msra.mxu0 %v545
        %555 = vmatprep.subr.mxu0 0.0
        %556 = vmatpush1.msra.mxu0 %v544
        %557 = vmatprep.subr.mxu0 0.0
        %558 = vmatpush1.msra.mxu0 %v543
        %559 = vmatprep.subr.mxu0 0.0
        %560 = vmatpush1.msra.mxu0 %v542
        %561 = vmatprep.subr.mxu0 0.0
        %562 = vmatpush1.msra.mxu0 %v541
        %563 = vmatprep.subr.mxu0 0.0
        %564 = vmatpush1.msra.mxu0 %v540
        %565 = vmatprep.subr.mxu0 0.0
        %566 = vmatpush1.msra.mxu0 %v539
        %567 = vmatprep.subr.mxu0 0.0
        %568 = vmatpush1.msra.mxu0 %v538
        %569 = vmatprep.subr.mxu0 0.0
        %570 = vmatpush1.msra.mxu0 %v537
        %571 = vmatprep.subr.mxu0 0.0
        %572 = vmatpush1.msra.mxu0 %v536
        %573 = vmatprep.subr.mxu0 0.0
        %574 = vmatpush1.msra.mxu0 %v535
        %575 = vmatprep.subr.mxu0 0.0
        %576 = vmatpush1.msra.mxu0 %v534
        %577 = vmatprep.subr.mxu0 0.0
        %578 = vmatpush1.msra.mxu0 %v533
        %579 = vmatprep.subr.mxu0 0.0
        %580 = vmatpush1.msra.mxu0 %v532
        %581 = vmatprep.subr.mxu0 0.0
        %582 = vmatpush1.msra.mxu0 %v531
        %583 = vmatprep.subr.mxu0 0.0
        %584 = vmatpush1.msra.mxu0 %v530
        %585 = vmatprep.subr.mxu0 0.0
        %586 = vmatpush2.msra.mxu0 0.0
        %587 = vmatprep.subr.mxu0 0.0
        %588 = vmatpush2.msra.mxu0 0.0
        %589 = vmatprep.subr.mxu0 0.0
        %590 = vmatpush2.msra.mxu0 0.0
        %591 = vmatprep.subr.mxu0 0.0
        %592 = vmatpush2.msra.mxu0 0.0
        %593 = vmatprep.subr.mxu0 0.0
        %594 = vmatpush2.msra.mxu0 0.0
        %595 = vmatprep.subr.mxu0 0.0
        %596 = vmatpush2.msra.mxu0 0.0
        %597 = vmatprep.subr.mxu0 0.0
        %598 = vmatpush2.msra.mxu0 0.0
        %599 = vmatprep.subr.mxu0 0.0
        %600 = vmatpush2.msra.mxu0 0.0
        %601 = vmatprep.subr.mxu0 0.0
        %602 = vmatpush2.msra.mxu0 0.0
        %603 = vmatprep.subr.mxu0 0.0
        %604 = vmatpush2.msra.mxu0 0.0
        %605 = vmatprep.subr.mxu0 0.0
        %606 = vmatpush2.msra.mxu0 0.0
        %607 = vmatprep.subr.mxu0 0.0
        %608 = vmatpush2.msra.mxu0 0.0
        %609 = vmatprep.subr.mxu0 0.0
        %610 = vmatpush2.msra.mxu0 0.0
        %611 = vmatprep.subr.mxu0 0.0
        %612 = vmatpush2.msra.mxu0 0.0
        %613 = vmatprep.subr.mxu0 0.0
        %614 = vmatpush2.msra.mxu0 0.0
        %615 = vmatprep.subr.mxu0 0.0
        %616 = vmatpush2.msra.mxu0 0.0
        %617 = vmatprep.mubr.f32.mxu0 0.0
        %618 = vmatmul.mubr.f32.gmra.mxu0 %v529
        %v619 = vpop.f32.mrf.mxu0
        %v620 = vadd.f32 %v551, %v619
        %v621 = vpop.f32.mrf.mxu0
        %622 = vdwg.mxu0
        %v623 = vand.u32 2147483647, %v620
        %vm624 = vcmp.le.f32.partialorder %v623, 0.7853982
        %vm625 = vcmp.lt.s32.totalorder %v620, 0
        %v626 = vand.u32 %v620, 2139095040
        %v627 = vshrl.u32 %v626, 23
        %v628 = vsub.s32 %v627, 127
        %v629 = vand.u32 2147483647, %v620
        %v630 = vand.u32 %v629, 8388607
        %v631 = vor.u32 %v630, 8388608
        %v632 = vsub.s32 0, %v631
        %v633 = vadd.s32 %v628, 1
        %vm634 = vcmp.gt.s32.totalorder %v633, 0
        %v635 = vsel %vm634, %v633, 0
        %v636 = vshrl.u32 %v635, 5
        %v637 = vand.u32 %v635, 31
        %v638 = vsub.s32 32, %v637
        %v639 = vshrl.u32 683565275, %v638
        %v640 = vshll.u32 683565275, %v637
        %v641 = vshrl.u32 2475754826, %v638
        %v642 = vor.u32 %v640, %v641
        %v643 = vshll.u32 2475754826, %v637
        %v644 = vshrl.u32 2131351028, %v638
        %v645 = vor.u32 %v643, %v644
        %v646 = vshll.u32 2131351028, %v637
        %v647 = vshrl.u32 2102212464, %v638
        %v648 = vor.u32 %v646, %v647
        %v649 = vshll.u32 2102212464, %v637
        %v650 = vshrl.u32 920167782, %v638
        %v651 = vor.u32 %v649, %v650
        %v652 = vshll.u32 920167782, %v637
        %v653 = vshrl.u32 1326507024, %v638
        %v654 = vor.u32 %v652, %v653
        %vm655 = vcmp.lt.s32.totalorder %v636, 1
        %vm656 = vcmp.lt.s32.totalorder %v636, 2
        %vm657 = vcmp.lt.s32.totalorder %v636, 3
        %vm658 = vcmp.lt.s32.totalorder %v636, 4
        %v659 = vsel %vm655, %v639, %v642
        %v660 = vsel %vm658, %v648, 2102212464
        %v661 = vsel %vm657, %v645, %v660
        %v662 = vsel %vm656, %v659, %v661
        %v663 = vsel %vm655, %v642, %v645
        %v664 = vsel %vm658, %v651, 920167782
        %v665 = vsel %vm657, %v648, %v664
        %v666 = vsel %vm656, %v663, %v665
        %v667 = vsel %vm655, %v645, %v648
        %v668 = vsel %vm658, %v654, 1326507024
        %v669 = vsel %vm657, %v651, %v668
        %v670 = vsel %vm656, %v667, %v669
        %v671 = vshll.u32 %v631, 8
        %v672 = vmul.u32.u64.compose %v671, %v670
        %v673 = vextract.low.u32 %v672
        %v674 = vextract.high.u32 %v672
        %v675 = vmul.u32.u64.compose %v671, %v666
        %v676 = vextract.low.u32 %v675
        %v677 = vextract.high.u32 %v675
        %v678 = vmul.u32 %v671, %v662
        %v679 = vadd.s32 %v674, %v676
        %vm680 = vc.u32 %v674, %v676
        %v681 = vadd.s32 %v677, 1
        %v682 = vsel %vm680, %v681, %v677
        %v683 = vadd.s32 %v678, %v682
        %v684 = vadd.s32 %v683, 536870912
        %v685 = vshrl.u32 %v684, 30
        %v686 = vshll.u32 %v685, 30
        %v687 = vsub.s32 %v683, %v686
        %vm688 = vcmp.lt.s32.totalorder %v687, 0
        %v689 = vsub.s32 0, %v687
        %v690 = vsel %vm688, %v689, %v687
        %v691 = vclz %v690
        %v692 = vsub.s32 %v691, 2
        %vm693 = vcmp.gt.s32.totalorder 0, %v692
        %v694 = vsel %vm693, 0, %v692
        %v695 = vsub.s32 32, %v694
        %v696 = vshll.u32 %v687, %v694
        %v697 = vshrl.u32 %v679, %v695
        %v698 = vor.u32 %v696, %v697
        %v699 = vsub.s32 4294967266, %v694
        %v700 = vadd.s32 %v699, 127
        %v701 = vshll.u32 %v700, 23
        %v702 = vor.u32 4788187, %v701
        %v703 = vand.u32 2147483647, %v702
        %v705 = vcvt.s32.f32 %v698
        %v706 = vmul.f32 %v705, %v703
        %v707 = vxor.u32 %v706, 2147483648
        %v708 = vsel %vm625, %v707, %v706
        %v709 = vsub.s32 4, %v685
        %v710 = vsel %vm625, %v709, %v685
        %v711 = vsel %vm624, %v620, %v708
        %v712 = vsel %vm624, 0, %v710
        %v713 = vcosq.f32.pop %v711
        %v714 = vsinq.f32.pop %v711
        %vm715 = vweird.f32 %v620
        %v716 = vadd.s32 %v712, 3
        %v717 = vand.u32 %v716, 3
        %vm718 = vcmp.lt.s32.totalorder %v717, 2
        %vm719 = vcmp.eq.s32.totalorder %v717, 0
        %v720 = vxor.u32 %v714, 2147483648
        %v721 = vsel %vm719, %v713, %v720
        %vm722 = vcmp.eq.s32.totalorder %v717, 2
        %v723 = vxor.u32 %v713, 2147483648
        %v724 = vsel %vm722, %v723, %v714
        %v725 = vsel %vm718, %v721, %v724
        %v726 = vsel %vm715, nan, %v725
        %v727 = vld [vmem:[#allocation2] sm:$0xff]
        %v728 = vld [vmem:[#allocation2 + $0x8] sm:$0xff]
        %v729 = vld [vmem:[#allocation2 + $0x10] sm:$0xff]
        %v730 = vld [vmem:[#allocation2 + $0x18] sm:$0xff]
        %v731 = vld [vmem:[#allocation2 + $0x20] sm:$0xff]
        %v732 = vld [vmem:[#allocation2 + $0x28] sm:$0xff]
        %v733 = vld [vmem:[#allocation2 + $0x30] sm:$0xff]
        %v734 = vld [vmem:[#allocation2 + $0x38] sm:$0xff]
        %v735 = vld [vmem:[#allocation2 + $0x40] sm:$0xff]
        %v736 = vld [vmem:[#allocation2 + $0x48] sm:$0xff]
        %v737 = vld [vmem:[#allocation2 + $0x50] sm:$0xff]
        %v738 = vld [vmem:[#allocation2 + $0x58] sm:$0xff]
        %v739 = vld [vmem:[#allocation2 + $0x60] sm:$0xff]
        %v740 = vld [vmem:[#allocation2 + $0x68] sm:$0xff]
        %v741 = vld [vmem:[#allocation2 + $0x70] sm:$0xff]
        %v742 = vld [vmem:[#allocation2 + $0x78] sm:$0xff]
        %v743 = vld [vmem:[%s6] sm:$0x1]
        %v745 = vlaneseq
        %v746 = vshrl.u32 %v745, 7
        %v747 = vsub.s32 0, %v746
        %v748 = vrot.slane %v743, %v747
        %750 = vmatprep.subr.mxu0 0.0
        %751 = vmatpush1.msra.mxu0 %v742
        %752 = vmatprep.subr.mxu0 0.0
        %753 = vmatpush1.msra.mxu0 %v741
        %754 = vmatprep.subr.mxu0 0.0
        %755 = vmatpush1.msra.mxu0 %v740
        %756 = vmatprep.subr.mxu0 0.0
        %757 = vmatpush1.msra.mxu0 %v739
        %758 = vmatprep.subr.mxu0 0.0
        %759 = vmatpush1.msra.mxu0 %v738
        %760 = vmatprep.subr.mxu0 0.0
        %761 = vmatpush1.msra.mxu0 %v737
        %762 = vmatprep.subr.mxu0 0.0
        %763 = vmatpush1.msra.mxu0 %v736
        %764 = vmatprep.subr.mxu0 0.0
        %765 = vmatpush1.msra.mxu0 %v735
        %766 = vmatprep.subr.mxu0 0.0
        %767 = vmatpush1.msra.mxu0 %v734
        %768 = vmatprep.subr.mxu0 0.0
        %769 = vmatpush1.msra.mxu0 %v733
        %770 = vmatprep.subr.mxu0 0.0
        %771 = vmatpush1.msra.mxu0 %v732
        %772 = vmatprep.subr.mxu0 0.0
        %773 = vmatpush1.msra.mxu0 %v731
        %774 = vmatprep.subr.mxu0 0.0
        %775 = vmatpush1.msra.mxu0 %v730
        %776 = vmatprep.subr.mxu0 0.0
        %777 = vmatpush1.msra.mxu0 %v729
        %778 = vmatprep.subr.mxu0 0.0
        %779 = vmatpush1.msra.mxu0 %v728
        %780 = vmatprep.subr.mxu0 0.0
        %781 = vmatpush1.msra.mxu0 %v727
        %782 = vmatprep.subr.mxu0 0.0
        %783 = vmatpush2.msra.mxu0 0.0
        %784 = vmatprep.subr.mxu0 0.0
        %785 = vmatpush2.msra.mxu0 0.0
        %786 = vmatprep.subr.mxu0 0.0
        %787 = vmatpush2.msra.mxu0 0.0
        %788 = vmatprep.subr.mxu0 0.0
        %789 = vmatpush2.msra.mxu0 0.0
        %790 = vmatprep.subr.mxu0 0.0
        %791 = vmatpush2.msra.mxu0 0.0
        %792 = vmatprep.subr.mxu0 0.0
        %793 = vmatpush2.msra.mxu0 0.0
        %794 = vmatprep.subr.mxu0 0.0
        %795 = vmatpush2.msra.mxu0 0.0
        %796 = vmatprep.subr.mxu0 0.0
        %797 = vmatpush2.msra.mxu0 0.0
        %798 = vmatprep.subr.mxu0 0.0
        %799 = vmatpush2.msra.mxu0 0.0
        %800 = vmatprep.subr.mxu0 0.0
        %801 = vmatpush2.msra.mxu0 0.0
        %802 = vmatprep.subr.mxu0 0.0
        %803 = vmatpush2.msra.mxu0 0.0
        %804 = vmatprep.subr.mxu0 0.0
        %805 = vmatpush2.msra.mxu0 0.0
        %806 = vmatprep.subr.mxu0 0.0
        %807 = vmatpush2.msra.mxu0 0.0
        %808 = vmatprep.subr.mxu0 0.0
        %809 = vmatpush2.msra.mxu0 0.0
        %810 = vmatprep.subr.mxu0 0.0
        %811 = vmatpush2.msra.mxu0 0.0
        %812 = vmatprep.subr.mxu0 0.0
        %813 = vmatpush2.msra.mxu0 0.0
        %814 = vmatprep.mubr.f32.mxu0 0.0
        %815 = vmatmul.mubr.f32.gmra.mxu0 %v726
        %v816 = vpop.f32.mrf.mxu0
        %v817 = vadd.f32 %v748, %v816
        %v818 = vpop.f32.mrf.mxu0
        %819 = vdwg.mxu0
        %v820 = vand.u32 2147483647, %v817
        %vm821 = vcmp.le.f32.partialorder %v820, 0.7853982
        %vm822 = vcmp.lt.s32.totalorder %v817, 0
        %v823 = vand.u32 %v817, 2139095040
        %v824 = vshrl.u32 %v823, 23
        %v825 = vsub.s32 %v824, 127
        %v826 = vand.u32 2147483647, %v817
        %v827 = vand.u32 %v826, 8388607
        %v828 = vor.u32 %v827, 8388608
        %v829 = vsub.s32 0, %v828
        %v830 = vadd.s32 %v825, 1
        %vm831 = vcmp.gt.s32.totalorder %v830, 0
        %v832 = vsel %vm831, %v830, 0
        %v833 = vshrl.u32 %v832, 5
        %v834 = vand.u32 %v832, 31
        %v835 = vsub.s32 32, %v834
        %v836 = vshrl.u32 683565275, %v835
        %v837 = vshll.u32 683565275, %v834
        %v838 = vshrl.u32 2475754826, %v835
        %v839 = vor.u32 %v837, %v838
        %v840 = vshll.u32 2475754826, %v834
        %v841 = vshrl.u32 2131351028, %v835
        %v842 = vor.u32 %v840, %v841
        %v843 = vshll.u32 2131351028, %v834
        %v844 = vshrl.u32 2102212464, %v835
        %v845 = vor.u32 %v843, %v844
        %v846 = vshll.u32 2102212464, %v834
        %v847 = vshrl.u32 920167782, %v835
        %v848 = vor.u32 %v846, %v847
        %v849 = vshll.u32 920167782, %v834
        %v850 = vshrl.u32 1326507024, %v835
        %v851 = vor.u32 %v849, %v850
        %vm852 = vcmp.lt.s32.totalorder %v833, 1
        %vm853 = vcmp.lt.s32.totalorder %v833, 2
        %vm854 = vcmp.lt.s32.totalorder %v833, 3
        %vm855 = vcmp.lt.s32.totalorder %v833, 4
        %v856 = vsel %vm852, %v836, %v839
        %v857 = vsel %vm855, %v845, 2102212464
        %v858 = vsel %vm854, %v842, %v857
        %v859 = vsel %vm853, %v856, %v858
        %v860 = vsel %vm852, %v839, %v842
        %v861 = vsel %vm855, %v848, 920167782
        %v862 = vsel %vm854, %v845, %v861
        %v863 = vsel %vm853, %v860, %v862
        %v864 = vsel %vm852, %v842, %v845
        %v865 = vsel %vm855, %v851, 1326507024
        %v866 = vsel %vm854, %v848, %v865
        %v867 = vsel %vm853, %v864, %v866
        %v868 = vshll.u32 %v828, 8
        %v869 = vmul.u32.u64.compose %v868, %v867
        %v870 = vextract.low.u32 %v869
        %v871 = vextract.high.u32 %v869
        %v872 = vmul.u32.u64.compose %v868, %v863
        %v873 = vextract.low.u32 %v872
        %v874 = vextract.high.u32 %v872
        %v875 = vmul.u32 %v868, %v859
        %v876 = vadd.s32 %v871, %v873
        %vm877 = vc.u32 %v871, %v873
        %v878 = vadd.s32 %v874, 1
        %v879 = vsel %vm877, %v878, %v874
        %v880 = vadd.s32 %v875, %v879
        %v881 = vadd.s32 %v880, 536870912
        %v882 = vshrl.u32 %v881, 30
        %v883 = vshll.u32 %v882, 30
        %v884 = vsub.s32 %v880, %v883
        %vm885 = vcmp.lt.s32.totalorder %v884, 0
        %v886 = vsub.s32 0, %v884
        %v887 = vsel %vm885, %v886, %v884
        %v888 = vclz %v887
        %v889 = vsub.s32 %v888, 2
        %vm890 = vcmp.gt.s32.totalorder 0, %v889
        %v891 = vsel %vm890, 0, %v889
        %v892 = vsub.s32 32, %v891
        %v893 = vshll.u32 %v884, %v891
        %v894 = vshrl.u32 %v876, %v892
        %v895 = vor.u32 %v893, %v894
        %v896 = vsub.s32 4294967266, %v891
        %v897 = vadd.s32 %v896, 127
        %v898 = vshll.u32 %v897, 23
        %v899 = vor.u32 4788187, %v898
        %v900 = vand.u32 2147483647, %v899
        %v902 = vcvt.s32.f32 %v895
        %v903 = vmul.f32 %v902, %v900
        %v904 = vxor.u32 %v903, 2147483648
        %v905 = vsel %vm822, %v904, %v903
        %v906 = vsub.s32 4, %v882
        %v907 = vsel %vm822, %v906, %v882
        %v908 = vsel %vm821, %v817, %v905
        %v909 = vsel %vm821, 0, %v907
        %v910 = vcosq.f32.pop %v908
        %v911 = vsinq.f32.pop %v908
        %vm912 = vweird.f32 %v817
        %v913 = vadd.s32 %v909, 3
        %v914 = vand.u32 %v913, 3
        %vm915 = vcmp.lt.s32.totalorder %v914, 2
        %vm916 = vcmp.eq.s32.totalorder %v914, 0
        %v917 = vxor.u32 %v911, 2147483648
        %v918 = vsel %vm916, %v910, %v917
        %vm919 = vcmp.eq.s32.totalorder %v914, 2
        %v920 = vxor.u32 %v910, 2147483648
        %v921 = vsel %vm919, %v920, %v911
        %v922 = vsel %vm915, %v918, %v921
        %v923 = vsel %vm912, nan, %v922
        %v924 = vld [vmem:[%s7] sm:$0xff]
        %v925 = vld [vmem:[%s7 + $0x8] sm:$0xff]
        %v926 = vld [vmem:[%s7 + $0x10] sm:$0xff]
        %v927 = vld [vmem:[%s7 + $0x18] sm:$0xff]
        %v928 = vld [vmem:[%s7 + $0x20] sm:$0xff]
        %v929 = vld [vmem:[%s7 + $0x28] sm:$0xff]
        %v930 = vld [vmem:[%s7 + $0x30] sm:$0xff]
        %v931 = vld [vmem:[%s7 + $0x38] sm:$0xff]
        %v932 = vld [vmem:[%s7 + $0x40] sm:$0xff]
        %v933 = vld [vmem:[%s7 + $0x48] sm:$0xff]
        %v934 = vld [vmem:[%s7 + $0x50] sm:$0xff]
        %v935 = vld [vmem:[%s7 + $0x58] sm:$0xff]
        %v936 = vld [vmem:[%s7 + $0x60] sm:$0xff]
        %v937 = vld [vmem:[%s7 + $0x68] sm:$0xff]
        %v938 = vld [vmem:[%s7 + $0x70] sm:$0xff]
        %v939 = vld [vmem:[%s7 + $0x78] sm:$0xff]
        %v940 = vld [vmem:[%s8] sm:$0x1]
        %v942 = vlaneseq
        %v943 = vshrl.u32 %v942, 7
        %v944 = vsub.s32 0, %v943
        %v945 = vrot.slane %v940, %v944
        %947 = vmatprep.subr.mxu0 0.0
        %948 = vmatpush1.msra.mxu0 %v939
        %949 = vmatprep.subr.mxu0 0.0
        %950 = vmatpush1.msra.mxu0 %v938
        %951 = vmatprep.subr.mxu0 0.0
        %952 = vmatpush1.msra.mxu0 %v937
        %953 = vmatprep.subr.mxu0 0.0
        %954 = vmatpush1.msra.mxu0 %v936
        %955 = vmatprep.subr.mxu0 0.0
        %956 = vmatpush1.msra.mxu0 %v935
        %957 = vmatprep.subr.mxu0 0.0
        %958 = vmatpush1.msra.mxu0 %v934
        %959 = vmatprep.subr.mxu0 0.0
        %960 = vmatpush1.msra.mxu0 %v933
        %961 = vmatprep.subr.mxu0 0.0
        %962 = vmatpush1.msra.mxu0 %v932
        %963 = vmatprep.subr.mxu0 0.0
        %964 = vmatpush1.msra.mxu0 %v931
        %965 = vmatprep.subr.mxu0 0.0
        %966 = vmatpush1.msra.mxu0 %v930
        %967 = vmatprep.subr.mxu0 0.0
        %968 = vmatpush1.msra.mxu0 %v929
        %969 = vmatprep.subr.mxu0 0.0
        %970 = vmatpush1.msra.mxu0 %v928
        %971 = vmatprep.subr.mxu0 0.0
        %972 = vmatpush1.msra.mxu0 %v927
        %973 = vmatprep.subr.mxu0 0.0
        %974 = vmatpush1.msra.mxu0 %v926
        %975 = vmatprep.subr.mxu0 0.0
        %976 = vmatpush1.msra.mxu0 %v925
        %977 = vmatprep.subr.mxu0 0.0
        %978 = vmatpush1.msra.mxu0 %v924
        %979 = vmatprep.subr.mxu0 0.0
        %980 = vmatpush2.msra.mxu0 0.0
        %981 = vmatprep.subr.mxu0 0.0
        %982 = vmatpush2.msra.mxu0 0.0
        %983 = vmatprep.subr.mxu0 0.0
        %984 = vmatpush2.msra.mxu0 0.0
        %985 = vmatprep.subr.mxu0 0.0
        %986 = vmatpush2.msra.mxu0 0.0
        %987 = vmatprep.subr.mxu0 0.0
        %988 = vmatpush2.msra.mxu0 0.0
        %989 = vmatprep.subr.mxu0 0.0
        %990 = vmatpush2.msra.mxu0 0.0
        %991 = vmatprep.subr.mxu0 0.0
        %992 = vmatpush2.msra.mxu0 0.0
        %993 = vmatprep.subr.mxu0 0.0
        %994 = vmatpush2.msra.mxu0 0.0
        %995 = vmatprep.subr.mxu0 0.0
        %996 = vmatpush2.msra.mxu0 0.0
        %997 = vmatprep.subr.mxu0 0.0
        %998 = vmatpush2.msra.mxu0 0.0
        %999 = vmatprep.subr.mxu0 0.0
        %1000 = vmatpush2.msra.mxu0 0.0
        %1001 = vmatprep.subr.mxu0 0.0
        %1002 = vmatpush2.msra.mxu0 0.0
        %1003 = vmatprep.subr.mxu0 0.0
        %1004 = vmatpush2.msra.mxu0 0.0
        %1005 = vmatprep.subr.mxu0 0.0
        %1006 = vmatpush2.msra.mxu0 0.0
        %1007 = vmatprep.subr.mxu0 0.0
        %1008 = vmatpush2.msra.mxu0 0.0
        %1009 = vmatprep.subr.mxu0 0.0
        %1010 = vmatpush2.msra.mxu0 0.0
        %1011 = vmatprep.mubr.f32.mxu0 0.0
        %1012 = vmatmul.mubr.f32.gmra.mxu0 %v923
        %v1013 = vpop.f32.mrf.mxu0
        %v1014 = vadd.f32 %v945, %v1013
        %v1015 = vpop.f32.mrf.mxu0
        %1016 = vdwg.mxu0
        %vm1017 = vcmask 97280
        %1018 = vst.msk [vmem:[%s338] sm:$0xff] %vm1017, %v1014
        %s1019 = sand.u32 %s226, 1
        %s1020 = scalar_lea.sflag [#allocation4], %s1019
        %s1021 = sand.u32 %s226, 1
        %s1022 = smul.addr %s1021, 8
        %s1023 = scalar_lea.vmem [#allocation5], %s1022
        // Predicated region
        $region61: #{tpu_custom_call.1} parent=55 // pred_check
          %p1024 = pneg %p236
        $region62: #{tpu_custom_call.1} parent=55 // pred_check_branch
          %1026 = sbr.rel (%p1024) target = $region64
        $region63: #{tpu_custom_call.1} parent=55 // pred_region
          %s1028 = ssub.s32 128, 128
          %1029 = vsyncadd %s1020, %s1028
          %s1030 = smul.addr %s24, 128
          %s1031 = scalar_lea.hbm %s9, %s1030
          %s1033 = sshll.u32 %s1023, 4
          %s1034 = int_to_ptr.vmem [resolvable:$true] %s1033
          %1036 = dma.vmem_to_hbm [thread:$0]  %s1034, 128, %s1031, %s1020
        $region64: #{tpu_custom_call.1} parent=55 // pred_fallthru
          _
      $region56: #{tpu_custom_call.1} parent=5 // pred_fallthru
        _
      %p1037 = scmp.le.s32.totalorder 2, %s19
      // Predicated region
      $region65: #{tpu_custom_call.1} parent=5 // pred_check
        %p1038 = pneg %p1037
      $region66: #{tpu_custom_call.1} parent=5 // pred_check_branch
        %1040 = sbr.rel (%p1038) target = $region68
      $region67: #{tpu_custom_call.1} parent=5 // pred_region
        %s1041 = ssub.s32 %s19, 2
        // Predicated region
        $region69: #{tpu_custom_call.1} parent=67 // pred_check
          %p1042 = pneg %p242
        $region70: #{tpu_custom_call.1} parent=67 // pred_check_branch
          %1044 = sbr.rel (%p1042) target = $region72
        $region71: #{tpu_custom_call.1} parent=67 // pred_region
          %s1045 = sand.u32 %s227, 1
          %s1046 = scalar_lea.sflag [#allocation4], %s1045
          %s1047 = sand.u32 %s227, 1
          %s1048 = smul.addr %s1047, 8
          %s1049 = scalar_lea.vmem [#allocation5], %s1048
          %1050 = dma.done %s1046, 128
        $region72: #{tpu_custom_call.1} parent=67 // pred_fallthru
          _
      $region68: #{tpu_custom_call.1} parent=5 // pred_fallthru
        _
    $region6: #{tpu_custom_call.1} parent=1 // loop_footer
      %s23 = sadd.s32 1, %s19
    $region7: #{tpu_custom_call.1} parent=1 // loop_footer_branch
      %18 = sbr.rel target = $region3
    $region8: #{tpu_custom_call.1} parent=1 // loop_exit
      _
    %1051 = vsyncpa [#allocation3], 1
    %s1052 = scalar_lea.sflag [#allocation3], 1
    %1053 = vsyncpa %s1052, 1
    %1054 = vsyncpa [#allocation4], 1
    %s1055 = scalar_lea.sflag [#allocation4], 1
    %1056 = vsyncpa %s1055, 1

</llo_original>
